<compile_context>
chip_gen: v5e
topology: v5e:2x2
jax: 0.10.0
libtpu: 0.0.40
codegen_flags: <defaults>
</compile_context>

<pallas_src>
import functools
import math

import jax
import jax.numpy as jnp
from jax import lax
from jax.experimental import pallas as pl
from jax.experimental.pallas import tpu as pltpu

_SCALE = 1.0 / math.sqrt(10.0)   # matches torch: scores / np.sqrt(10)
_NEG_INF = -1.0e30               # finite "-inf" for masked (padded) keys


# --------------------------------------------------------------------------- #
# Chip-aware configuration
# --------------------------------------------------------------------------- #
def _chip_config():
    """Returns (vmem_limit_bytes, tile_budget_bytes, num_tensorcores, max_tq, max_tk)."""
    kind = ""
    try:
        kind = jax.devices()[0].device_kind.lower()
    except Exception:
        pass
    is_v7 = "v7" in kind
    is_v5 = "v5" in kind
    vmem_cap = None
    try:
        vmem_cap = int(pltpu.get_tpu_info().vmem_capacity_bytes)
    except Exception:
        vmem_cap = None
    if vmem_cap is None or vmem_cap <= 0:
        vmem_cap = (64 if is_v7 else 128) * 1024 * 1024
    num_tc = 2 if (is_v7 or vmem_cap <= 64 * 1024 * 1024) else 1
    vmem_limit = min((vmem_cap * 3) // 4, 100 * 1024 * 1024)   # 48 MiB on v7x, 96 MiB on v5e/v6e
    tile_budget = vmem_limit // 2
    max_tq = 128 if is_v5 else 256     # MXU: 4x128^2 (v5e) vs 2x256^2 (v6e/v7x)
    max_tk = 2 * max_tq
    return vmem_limit, tile_budget, num_tc, max_tq, max_tk


def _blk_bytes(bht, d1, d0, itemsize):
    """VMEM bytes of a (bht, d1, d0) block including (8, 128) layout padding."""
    return bht * (-(-d1 // 8) * 8) * (-(-d0 // 128) * 128) * itemsize


def _single_bytes(bht, tq, sk, d, dv, isz, attn_isz, with_attn):
    """Per-grid-step VMEM for the single-pass kernel: double-buffered blocks plus
    all live f32 intermediates (scores, e, attn/unnormalized ctx, MXU-cast copies)."""
    io = 2 * (_blk_bytes(bht, tq, d, isz) + _blk_bytes(bht, sk, d, isz)
              + _blk_bytes(bht, sk, dv, isz) + _blk_bytes(bht, tq, dv, isz))
    if with_attn:
        io += 2 * _blk_bytes(bht, tq, sk, attn_isz)
    inter = (3 * _blk_bytes(bht, tq, sk, 4)
             + _blk_bytes(bht, tq, d, 4) + _blk_bytes(bht, tq, dv, 4)
             + _blk_bytes(bht, tq, sk, 2)
             + _blk_bytes(bht, sk, d, 2) + _blk_bytes(bht, sk, dv, 2))
    return io + inter


def _flash_bytes(bht, tq, tk, d, dv, isz):
    """Per-grid-step VMEM for the flash (Sk-tiled) kernel, scratch included."""
    io = 2 * (_blk_bytes(bht, tq, d, isz) + _blk_bytes(bht, tk, d, isz)
              + _blk_bytes(bht, tk, dv, isz) + _blk_bytes(bht, tq, dv, isz))
    scratch = 2 * _blk_bytes(bht, tq, 1, 4) + _blk_bytes(bht, tq, dv, 4)
    inter = (3 * _blk_bytes(bht, tq, tk, 4)
             + _blk_bytes(bht, tq, d, 4) + _blk_bytes(bht, tq, dv, 4)
             + _blk_bytes(bht, tq, tk, 2)
             + _blk_bytes(bht, tk, d, 2) + _blk_bytes(bht, tk, dv, 2))
    return io + scratch + inter


def _choose_bht(bh, per_head_bytes, tile_budget, num_tc):
    """Heads per grid step: fill the VMEM tile budget; only force >=2 head blocks
    when the chip really has 2 TensorCores (v7x). On 1-TC chips the grid is a
    serial loop, so splitting would just add per-step overhead."""
    bht = max(1, min(bh, tile_budget // max(1, per_head_bytes)))
    while bh % bht:
        bht -= 1
    if num_tc > 1 and bht == bh and bh > 1:
        bht = bh // 2
        while bh % bht:
            bht -= 1
    return max(1, bht)


def _cost(bh, sq, sk, d, dv, isz, attn_isz, with_attn):
    flops = 2 * bh * sq * sk * (d + dv)
    bytes_accessed = isz * bh * (sq * d + sk * d + sk * dv + sq * dv)
    if with_attn:
        bytes_accessed += attn_isz * bh * sq * sk
    return pl.CostEstimate(flops=flops, transcendentals=bh * sq * sk,
                           bytes_accessed=bytes_accessed)


# --------------------------------------------------------------------------- #
# Kernel bodies
# --------------------------------------------------------------------------- #
def _softmax_pieces(q, k, mxu_dtype):
    # q: (BHt, Tq, D), k: (BHt, Sk, D)  — scale folded into Q (applied in f32).
    qs = (q.astype(jnp.float32) * _SCALE).astype(mxu_dtype)
    scores = lax.dot_general(
        qs, k.astype(mxu_dtype),
        dimension_numbers=(((2,), (2,)), ((0,), (0,))),       # NT: no k transpose
        preferred_element_type=jnp.float32)                   # (BHt, Tq, Sk) f32
    m = jnp.max(scores, axis=-1, keepdims=True)
    e = jnp.exp(scores - m)
    s = jnp.sum(e, axis=-1, keepdims=True)
    return e, s


def _full_kernel(q_ref, k_ref, v_ref, ctx_ref, attn_ref, *, mxu_dtype):
    e, s = _softmax_pieces(q_ref[...], k_ref[...], mxu_dtype)
    attn = e * pl.reciprocal(s, approx=True)                  # EUP reciprocal
    ctx = lax.dot_general(
        attn.astype(mxu_dtype), v_ref[...].astype(mxu_dtype),
        dimension_numbers=(((2,), (1,)), ((0,), (0,))),
        preferred_element_type=jnp.float32)                   # (BHt, Tq, Dv)
    ctx_ref[...] = ctx.astype(ctx_ref.dtype)
    attn_ref[...] = attn.astype(attn_ref.dtype)


def _ctx_only_kernel(q_ref, k_ref, v_ref, ctx_ref, *, mxu_dtype):
    e, s = _softmax_pieces(q_ref[...], k_ref[...], mxu_dtype)
    ctx_un = lax.dot_general(                                  # deferred normalization
        e.astype(mxu_dtype), v_ref[...].astype(mxu_dtype),
        dimension_numbers=(((2,), (1,)), ((0,), (0,))),
        preferred_element_type=jnp.float32)
    ctx_ref[...] = (ctx_un * pl.reciprocal(s, approx=True)).astype(ctx_ref.dtype)


def _flash_ctx_kernel(q_ref, k_ref, v_ref, ctx_ref, m_sc, l_sc, acc_sc, *,
                      mxu_dtype, tk, sk_valid, mask_keys):
    """Online-softmax over Sk tiles; ctx written (normalized) at the last kb step."""
    kb = pl.program_id(2)

    @pl.when(kb == 0)
    def _():
        m_sc[...] = jnp.full_like(m_sc, -jnp.inf)
        l_sc[...] = jnp.zeros_like(l_sc)
        acc_sc[...] = jnp.zeros_like(acc_sc)

    qs = (q_ref[...].astype(jnp.float32) * _SCALE).astype(mxu_dtype)
    s = lax.dot_general(
        qs, k_ref[...].astype(mxu_dtype),
        dimension_numbers=(((2,), (2,)), ((0,), (0,))),
        preferred_element_type=jnp.float32)                    # (BHt, Tq, Tk) f32
    if mask_keys:
        key_idx = kb * tk + lax.broadcasted_iota(jnp.int32, s.shape, 2)
        s = jnp.where(key_idx < sk_valid, s, _NEG_INF)

    m_prev = m_sc[...]
    m_new = jnp.maximum(m_prev, jnp.max(s, axis=-1, keepdims=True))
    alpha = jnp.exp(m_prev - m_new)
    p = jnp.exp(s - m_new)
    l_sc[...] = alpha * l_sc[...] + jnp.sum(p, axis=-1, keepdims=True)
    pv = lax.dot_general(
        p.astype(mxu_dtype), v_ref[...].astype(mxu_dtype),
        dimension_numbers=(((2,), (1,)), ((0,), (0,))),
        preferred_element_type=jnp.float32)                    # (BHt, Tq, Dv) f32
    acc_sc[...] = alpha * acc_sc[...] + pv
    m_sc[...] = m_new

    @pl.when(kb == pl.num_programs(2) - 1)
    def _():
        ctx_ref[...] = (acc_sc[...] * pl.reciprocal(l_sc[...], approx=True)
                        ).astype(ctx_ref.dtype)


# --------------------------------------------------------------------------- #
# Wrapper
# --------------------------------------------------------------------------- #
def scaled_dot_product_attention(Q, K, V, attn_mask=None, *, return_attn=True,
                                 attn_dtype=None, use_bf16_mxu=True,
                                 _force_flash=False, _tk=None):
    # TODO(synk): attn_mask accepted for API parity; the reference forward never
    # applies it, so it is ignored here as well.
    del attn_mask
    B, H, Sq, D = Q.shape
    Sk = K.shape[2]
    Dv = V.shape[3]
    BH = B * H
    out_dtype = Q.dtype
    attn_dtype = jnp.dtype(out_dtype if attn_dtype is None else attn_dtype)
    itemsize = jnp.dtype(Q.dtype).itemsize
    attn_itemsize = attn_dtype.itemsize
    mxu_dtype = (jnp.bfloat16 if (use_bf16_mxu and Q.dtype == jnp.float32)
                 else Q.dtype)

    vmem_limit, tile_budget, num_tc, max_tq, max_tk = _chip_config()

    q = Q.reshape(BH, Sq, D)
    k = K.reshape(BH, Sk, D)
    v = V.reshape(BH, Sk, Dv)

    Tq0 = min(Sq, max_tq)
    single_bytes_1 = _single_bytes(1, Tq0, Sk, D, Dv, itemsize, attn_itemsize,
                                   return_attn)
    use_flash = ((not return_attn) and Sk >= 8 and
                 (_force_flash or Sk > max_tk or single_bytes_1 > tile_budget))

    # ---------------------------------------------------------------- #
    # Single-pass path (needed for the attn matrix; also the small-Sk fast path)
    # ---------------------------------------------------------------- #
    if not use_flash:
        Tq = Tq0
        if Sq > max_tq:
            while Tq > 64 and _single_bytes(1, Tq, Sk, D, Dv, itemsize,
                                            attn_itemsize,
                                            return_attn) > tile_budget:
                Tq //= 2
        Sq_pad = -(-Sq // Tq) * Tq
        qp = jnp.pad(q, ((0, 0), (0, Sq_pad - Sq), (0, 0))) if Sq_pad != Sq else q
        nq = Sq_pad // Tq

        per_head = _single_bytes(1, Tq, Sk, D, Dv, itemsize, attn_itemsize,
                                 return_attn)
        BHt = _choose_bht(BH, per_head, tile_budget, num_tc)
        grid = (BH // BHt, nq)

        in_specs = [
            pl.BlockSpec((BHt, Tq, D), lambda b, qb: (b, qb, 0)),
            pl.BlockSpec((BHt, Sk, D), lambda b, qb: (b, 0, 0)),
            pl.BlockSpec((BHt, Sk, Dv), lambda b, qb: (b, 0, 0)),
        ]
        ctx_spec = pl.BlockSpec((BHt, Tq, Dv), lambda b, qb: (b, qb, 0))
        cparams = pltpu.CompilerParams(
            dimension_semantics=("parallel", "arbitrary"),
            vmem_limit_bytes=vmem_limit)
        cost = _cost(BH, Sq, Sk, D, Dv, itemsize, attn_itemsize, return_attn)

        if return_attn:
            attn_spec = pl.BlockSpec((BHt, Tq, Sk), lambda b, qb: (b, qb, 0))
            ctx, attn = pl.pallas_call(
                functools.partial(_full_kernel, mxu_dtype=mxu_dtype),
                out_shape=(jax.ShapeDtypeStruct((BH, Sq_pad, Dv), out_dtype),
                           jax.ShapeDtypeStruct((BH, Sq_pad, Sk), attn_dtype)),
                grid_spec=pltpu.PrefetchScalarGridSpec(
                    num_scalar_prefetch=0, grid=grid,
                    in_specs=in_specs, out_specs=[ctx_spec, attn_spec]),
                compiler_params=cparams, cost_estimate=cost,
            )(qp, k, v)
            return (ctx[:, :Sq].reshape(B, H, Sq, Dv),
                    attn[:, :Sq].reshape(B, H, Sq, Sk))

        ctx = pl.pallas_call(
            functools.partial(_ctx_only_kernel, mxu_dtype=mxu_dtype),
            out_shape=jax.ShapeDtypeStruct((BH, Sq_pad, Dv), out_dtype),
            grid_spec=pltpu.PrefetchScalarGridSpec(
                num_scalar_prefetch=0, grid=grid,
                in_specs=in_specs, out_specs=ctx_spec),
            compiler_params=cparams, cost_estimate=cost,
        )(qp, k, v)
        return ctx[:, :Sq].reshape(B, H, Sq, Dv), None

    # ---------------------------------------------------------------- #
    # Flash path (ctx only): Sk tiled with online softmax
    # ---------------------------------------------------------------- #
    Tq = Tq0
    Sq_pad = -(-Sq // Tq) * Tq
    qp = jnp.pad(q, ((0, 0), (0, Sq_pad - Sq), (0, 0))) if Sq_pad != Sq else q
    nq = Sq_pad // Tq

    Tk = max_tk if _tk is None else int(_tk)
    Tk = max(8, min(Tk, (Sk // 8) * 8))   # multiple of 8, <= Sk (first block all-valid)
    Sk_pad = -(-Sk // Tk) * Tk
    kp = jnp.pad(k, ((0, 0), (0, Sk_pad - Sk), (0, 0))) if Sk_pad != Sk else k
    vp = jnp.pad(v, ((0, 0), (0, Sk_pad - Sk), (0, 0))) if Sk_pad != Sk else v
    nk = Sk_pad // Tk

    per_head = _flash_bytes(1, Tq, Tk, D, Dv, itemsize)
    BHt = _choose_bht(BH, per_head, tile_budget, num_tc)
    grid = (BH // BHt, nq, nk)

    in_specs = [
        pl.BlockSpec((BHt, Tq, D), lambda b, qb, kb: (b, qb, 0)),
        pl.BlockSpec((BHt, Tk, D), lambda b, qb, kb: (b, kb, 0)),
        pl.BlockSpec((BHt, Tk, Dv), lambda b, qb, kb: (b, kb, 0)),
    ]
    ctx_spec = pl.BlockSpec((BHt, Tq, Dv), lambda b, qb, kb: (b, qb, 0))
    cparams = pltpu.CompilerParams(
        dimension_semantics=("parallel", "arbitrary", "arbitrary"),
        vmem_limit_bytes=vmem_limit)
    cost = _cost(BH, Sq, Sk, D, Dv, itemsize, attn_itemsize, False)

    kernel = functools.partial(_flash_ctx_kernel, mxu_dtype=mxu_dtype, tk=Tk,
                               sk_valid=Sk, mask_keys=(Sk_pad != Sk))
    ctx = pl.pallas_call(
        kernel,
        out_shape=jax.ShapeDtypeStruct((BH, Sq_pad, Dv), out_dtype),
        grid_spec=pltpu.PrefetchScalarGridSpec(
            num_scalar_prefetch=0, grid=grid,
            in_specs=in_specs, out_specs=ctx_spec,
            scratch_shapes=[pltpu.VMEM((BHt, Tq, 1), jnp.float32),
                            pltpu.VMEM((BHt, Tq, 1), jnp.float32),
                            pltpu.VMEM((BHt, Tq, Dv), jnp.float32)]),
        compiler_params=cparams, cost_estimate=cost,
    )(qp, kp, vp)
    return ctx[:, :Sq].reshape(B, H, Sq, Dv), None


# --------------------------------------------------------------------------- #
# Reference + test
# --------------------------------------------------------------------------- #
def _reference(Q, K, V):
    scores = jnp.matmul(Q, jnp.swapaxes(K, -1, -2)) * _SCALE
    attn = jax.nn.softmax(scores, axis=-1)
    return jnp.matmul(attn, V), attn


if __name__ == "__main__":
    key = jax.random.PRNGKey(0)
    kq, kk, kv, kq2, kk2, kv2 = jax.random.split(key, 6)

    # Shapes matching MultiHeadAttentionBlock: 6 heads of dim 50 (300 hidden),
    # small batch / sequence.
    B, H, S, Dh = 2, 6, 8, 50
    Q = jax.random.normal(kq, (B, H, S, Dh), dtype=jnp.float32)
    K = jax.random.normal(kk, (B, H, S, Dh), dtype=jnp.float32)
    V = jax.random.normal(kv, (B, H, S, Dh), dtype=jnp.float32)
    ctx_ref, attn_ref = _reference(Q, K, V)

    # 1) Default path (context + attention matrix), bf16 MXU operands.
    ctx, attn = scaled_dot_product_attention(Q, K, V)
    jax.block_until_ready((ctx, attn))
    assert jnp.allclose(ctx, ctx_ref, atol=5e-2, rtol=5e-2), "context mismatch (bf16)"
    assert jnp.allclose(attn, attn_ref, atol=5e-2, rtol=5e-2), "attn mismatch (bf16)"

    # 2) Same path with f32 MXU operands — tight-tolerance math check.
    ctx32, attn32 = scaled_dot_product_attention(Q, K, V, use_bf16_mxu=False)
    jax.block_until_ready((ctx32, attn32))
    assert jnp.allclose(ctx32, ctx_ref, atol=5e-3, rtol=5e-3), "context mismatch (f32)"
    assert jnp.allclose(attn32, attn_ref, atol=5e-3, rtol=5e-3), "attn mismatch (f32)"

    # 3) ctx-only single-pass path (deferred softmax normalization).
    ctx_only, no_attn = scaled_dot_product_attention(
        Q, K, V, return_attn=False, use_bf16_mxu=False)
    jax.block_until_ready(ctx_only)
    assert no_attn is None
    assert jnp.allclose(ctx_only, ctx_ref, atol=5e-3, rtol=5e-3), "ctx-only mismatch"

    # 4) Flash (Sk-tiled online-softmax) ctx-only path, incl. padded-key masking.
    B2, H2, Sq2, Sk2, D2 = 1, 2, 64, 40, 32
    Q2 = jax.random.normal(kq2, (B2, H2, Sq2, D2), dtype=jnp.float32)
    K2 = jax.random.normal(kk2, (B2, H2, Sk2, D2), dtype=jnp.float32)
    V2 = jax.random.normal(kv2, (B2, H2, Sk2, D2), dtype=jnp.float32)
    ctx2_ref, _ = _reference(Q2, K2, V2)
    ctx2, _ = scaled_dot_product_attention(Q2, K2, V2, return_attn=False,
                                           use_bf16_mxu=False,
                                           _force_flash=True, _tk=16)
    jax.block_until_ready(ctx2)
    assert jnp.allclose(ctx2, ctx2_ref, atol=5e-3, rtol=5e-3), "flash ctx mismatch"

    # TODO(synk): the surrounding MutilHeadAttention stack (embedding, W_Q/W_K/W_V
    # linears, LayerNorm residual, Conv1d/BatchNorm/ReLU/AdaptiveMaxPool towers,
    # dropout and the FC head) is left to XLA; only the ScaledDotProductAttention
    # core runs as a Pallas kernel.
    print("KERNEL_OK")
</pallas_src>

<mosaic_0001>
module attributes {stable_mosaic.version = 11 : i64} {
  func.func @_full_kernel(%arg0: i32, %arg1: i32, %arg2: memref<12x8x50xf32, #tpu.memory_space<vmem>>, %arg3: memref<12x8x50xf32, #tpu.memory_space<vmem>>, %arg4: memref<12x8x50xf32, #tpu.memory_space<vmem>>, %arg5: memref<12x8x50xf32, #tpu.memory_space<vmem>>, %arg6: memref<12x8x8xf32, #tpu.memory_space<vmem>>) attributes {dimension_semantics = [#tpu.dimension_semantics<parallel>, #tpu.dimension_semantics<arbitrary>], iteration_bounds = array<i64: 1, 1>, scalar_prefetch = 0 : i64, scratch_operands = 0 : i64, tpu.core_type = #tpu.core_type<tc>, window_params = [{transform_indices = @transform_0, window_bounds = array<i64: 12, 8, 50>}, {transform_indices = @transform_1, window_bounds = array<i64: 12, 8, 50>}, {transform_indices = @transform_2, window_bounds = array<i64: 12, 8, 50>}, {transform_indices = @transform_3, window_bounds = array<i64: 12, 8, 50>}, {transform_indices = @transform_4, window_bounds = array<i64: 12, 8, 8>}]} {
    %c0 = arith.constant 0 : index
    %c0_0 = arith.constant 0 : index
    %c0_1 = arith.constant 0 : index
    %0 = vector.load %arg2[%c0, %c0_0, %c0_1] : memref<12x8x50xf32, #tpu.memory_space<vmem>>, vector<12x8x50xf32>
    %c0_2 = arith.constant 0 : index
    %c0_3 = arith.constant 0 : index
    %c0_4 = arith.constant 0 : index
    %1 = vector.load %arg3[%c0_2, %c0_3, %c0_4] : memref<12x8x50xf32, #tpu.memory_space<vmem>>, vector<12x8x50xf32>
    %cst = arith.constant 0.316227764 : f32
    %2 = vector.broadcast %cst : f32 to vector<12x8x50xf32>
    %3 = arith.mulf %0, %2 : vector<12x8x50xf32>
    %4 = arith.truncf %3 : vector<12x8x50xf32> to vector<12x8x50xbf16>
    %5 = arith.truncf %1 : vector<12x8x50xf32> to vector<12x8x50xbf16>
    %cst_5 = arith.constant dense<0.000000e+00> : vector<12x8x8xf32>
    %6 = tpu.matmul %4, %5, %cst_5 {dimension_numbers = #tpu.dot_dimension_numbers<[2], [2], [1], [1], [0, 0, 0, 1, 1, 1], [0], [0]>} : vector<12x8x50xbf16>, vector<12x8x50xbf16>, vector<12x8x8xf32> -> vector<12x8x8xf32>
    %cst_6 = arith.constant dense<0xFF800000> : vector<12x8xf32>
    %7 = vector.multi_reduction <maximumf>, %6, %cst_6 [2] : vector<12x8x8xf32> to vector<12x8xf32>
    %8 = vector.shape_cast %7 : vector<12x8xf32> to vector<12x8x1xf32>
    %9 = vector.broadcast %8 : vector<12x8x1xf32> to vector<12x8x8xf32>
    %10 = arith.subf %6, %9 : vector<12x8x8xf32>
    %11 = math.exp %10 : vector<12x8x8xf32>
    %cst_7 = arith.constant dense<0.000000e+00> : vector<12x8xf32>
    %12 = vector.multi_reduction <add>, %11, %cst_7 [2] : vector<12x8x8xf32> to vector<12x8xf32>
    %13 = vector.shape_cast %12 : vector<12x8xf32> to vector<12x8x1xf32>
    %14 = tpu.reciprocal %13 {approx = true} : vector<12x8x1xf32> -> vector<12x8x1xf32>
    %15 = vector.broadcast %14 : vector<12x8x1xf32> to vector<12x8x8xf32>
    %16 = arith.mulf %11, %15 : vector<12x8x8xf32>
    %17 = arith.truncf %16 : vector<12x8x8xf32> to vector<12x8x8xbf16>
    %c0_8 = arith.constant 0 : index
    %c0_9 = arith.constant 0 : index
    %c0_10 = arith.constant 0 : index
    %18 = vector.load %arg4[%c0_8, %c0_9, %c0_10] : memref<12x8x50xf32, #tpu.memory_space<vmem>>, vector<12x8x50xf32>
    %19 = arith.truncf %18 : vector<12x8x50xf32> to vector<12x8x50xbf16>
    %cst_11 = arith.constant dense<0.000000e+00> : vector<12x8x50xf32>
    %20 = tpu.matmul %17, %19, %cst_11 {dimension_numbers = #tpu.dot_dimension_numbers<[2], [1], [1], [2], [0, 0, 0, 1, 1, 2], [0], [0]>} : vector<12x8x8xbf16>, vector<12x8x50xbf16>, vector<12x8x50xf32> -> vector<12x8x50xf32>
    %c0_12 = arith.constant 0 : index
    %c0_13 = arith.constant 0 : index
    %c0_14 = arith.constant 0 : index
    %21 = vector.load %arg5[%c0_12, %c0_13, %c0_14] : memref<12x8x50xf32, #tpu.memory_space<vmem>>, vector<12x8x50xf32>
    tpu.vector_store %arg5[%c0_12, %c0_13, %c0_14], %20 {strides = array<i32>} : memref<12x8x50xf32, #tpu.memory_space<vmem>>, vector<12x8x50xf32>,
    %c0_15 = arith.constant 0 : index
    %c0_16 = arith.constant 0 : index
    %c0_17 = arith.constant 0 : index
    %22 = vector.load %arg6[%c0_15, %c0_16, %c0_17] : memref<12x8x8xf32, #tpu.memory_space<vmem>>, vector<12x8x8xf32>
    tpu.vector_store %arg6[%c0_15, %c0_16, %c0_17], %16 {strides = array<i32>} : memref<12x8x8xf32, #tpu.memory_space<vmem>>, vector<12x8x8xf32>,
    return
  }
  func.func @transform_0(%arg0: i32, %arg1: i32) -> (i32, i32, i32) {
    %c0_i32 = arith.constant 0 : i32
    %c0_i32_0 = arith.constant 0 : i32
    return %arg0, %arg1, %c0_i32 : i32, i32, i32
  }
  func.func @transform_1(%arg0: i32, %arg1: i32) -> (i32, i32, i32) {
    %c0_i32 = arith.constant 0 : i32
    %c0_i32_0 = arith.constant 0 : i32
    %c0_i32_1 = arith.constant 0 : i32
    return %arg0, %c0_i32, %c0_i32_0 : i32, i32, i32
  }
  func.func @transform_2(%arg0: i32, %arg1: i32) -> (i32, i32, i32) {
    %c0_i32 = arith.constant 0 : i32
    %c0_i32_0 = arith.constant 0 : i32
    %c0_i32_1 = arith.constant 0 : i32
    return %arg0, %c0_i32, %c0_i32_0 : i32, i32, i32
  }
  func.func @transform_3(%arg0: i32, %arg1: i32) -> (i32, i32, i32) {
    %c0_i32 = arith.constant 0 : i32
    %c0_i32_0 = arith.constant 0 : i32
    return %arg0, %arg1, %c0_i32 : i32, i32, i32
  }
  func.func @transform_4(%arg0: i32, %arg1: i32) -> (i32, i32, i32) {
    %c0_i32 = arith.constant 0 : i32
    %c0_i32_0 = arith.constant 0 : i32
    return %arg0, %arg1, %c0_i32 : i32, i32, i32
  }
}

</mosaic_0001>

<llo_original>
// kernel: tpu_custom_call.1
$region0: #{tpu_custom_call.1}
  #allocation0 [shape = 'u32[]', space=smem, size = 0x4, offset = 0x4, fixed_abs, tag = 'smem constant byte address 0x4 - core index']
  #allocation1 [shape = 'u32[72,128]{1,0:T(1,128)}', space=vmem, size = 0x9000, scoped, tag = 'internal scratch']
  %s0 = inlined_call_operand.hbm [shape: f32[12,8,50], index: 0, kind: input, shape index: {}]
  %s1 = inlined_call_operand.hbm [shape: f32[12,8,50], index: 1, kind: input, shape index: {}]
  %s2 = inlined_call_operand.hbm [shape: f32[12,8,50], index: 2, kind: input, shape index: {}]
  %s3 = inlined_call_operand.hbm [shape: f32[12,8,50], index: 3, kind: output, shape index: {0}]
  %s4 = inlined_call_operand.vmem [shape: f32[12,8,8], index: 4, kind: output, shape index: {1}]
  %5 = xla_tuple %s3, %s4
  %s6 = sld [smem:[#allocation0]]
  $region42: #{tpu_custom_call.1} parent=0
    _
  %s8 = ssub.s32 1, %s6
  %s9 = scalar_select 0, %s8, %s6
  $region1: #{tpu_custom_call.1} parent=0
    #allocation2 [shape = 'u8[49152]{0}', space=vmem, size = 0xc000, scoped, tag = 'input window, operand 0, single buffered']
    #allocation3 [shape = 's32[1]{0}', space=sflag, size = 0x4, scoped, tag = 'scoped memory for tpu_custom_call.1']
    #allocation4 [shape = 's32[1]{0}', space=sflag, size = 0x4, scoped, tag = 'scoped memory for tpu_custom_call.1']
    #allocation5 [shape = 'u8[49152]{0}', space=vmem, size = 0xc000, scoped, tag = 'input window, operand 1, single buffered']
    #allocation6 [shape = 's32[1]{0}', space=sflag, size = 0x4, scoped, tag = 'scoped memory for tpu_custom_call.1']
    #allocation7 [shape = 'u8[49152]{0}', space=vmem, size = 0xc000, scoped, tag = 'input window, operand 2, single buffered']
    #allocation8 [shape = 'u8[49152]{0}', space=vmem, size = 0xc000, scoped, tag = 'output window, operand 0, single buffered']
    %10 = vsyncpa [#allocation3], 0
    %11 = vsyncpa [#allocation6], 0
    %12 = vsyncpa [#allocation4], 0
    // Predicated region
    $region2: #{tpu_custom_call.1} parent=1 // pred_check
      _
    $region3: #{tpu_custom_call.1} parent=1 // pred_check_branch
      %14 = sbr.rel (0) target = $region5
    $region4: #{tpu_custom_call.1} parent=1 // pred_region
      %16 = vsyncadd [#allocation3], 0
      %s17 = sshll.u32 %s0, 4
      %s18 = int_to_ptr.hbm [resolvable:$true] %s17
      %s19 = sshll.u32 [#allocation2], 4
      %s20 = int_to_ptr.vmem [resolvable:$true] %s19
      %25 = dma.hbm_to_vmem [thread:$0]  %s18, 1536, %s20, [#allocation3], 128, 128, 8
    $region5: #{tpu_custom_call.1} parent=1 // pred_fallthru
      _
    // Predicated region
    $region6: #{tpu_custom_call.1} parent=1 // pred_check
      _
    $region7: #{tpu_custom_call.1} parent=1 // pred_check_branch
      %27 = sbr.rel (0) target = $region9
    $region8: #{tpu_custom_call.1} parent=1 // pred_region
      %29 = vsyncadd [#allocation6], 0
      %s30 = sshll.u32 %s1, 4
      %s31 = int_to_ptr.hbm [resolvable:$true] %s30
      %s32 = sshll.u32 [#allocation5], 4
      %s33 = int_to_ptr.vmem [resolvable:$true] %s32
      %38 = dma.hbm_to_vmem [thread:$0]  %s31, 1536, %s33, [#allocation6], 128, 128, 8
    $region9: #{tpu_custom_call.1} parent=1 // pred_fallthru
      _
    // Predicated region
    $region10: #{tpu_custom_call.1} parent=1 // pred_check
      _
    $region11: #{tpu_custom_call.1} parent=1 // pred_check_branch
      %40 = sbr.rel (0) target = $region13
    $region12: #{tpu_custom_call.1} parent=1 // pred_region
      %42 = vsyncadd [#allocation6], 0
      %s43 = sshll.u32 %s2, 4
      %s44 = int_to_ptr.hbm [resolvable:$true] %s43
      %s45 = sshll.u32 [#allocation7], 4
      %s46 = int_to_ptr.vmem [resolvable:$true] %s45
      %51 = dma.hbm_to_vmem [thread:$0]  %s44, 1536, %s46, [#allocation6], 128, 128, 8
    $region13: #{tpu_custom_call.1} parent=1 // pred_fallthru
      _
    // Predicated region
    $region14: #{tpu_custom_call.1} parent=1 // pred_check
      _
    $region15: #{tpu_custom_call.1} parent=1 // pred_check_branch
      %53 = sbr.rel (0) target = $region17
    $region16: #{tpu_custom_call.1} parent=1 // pred_region
      %55 = dma.done [#allocation3], 1536
    $region17: #{tpu_custom_call.1} parent=1 // pred_fallthru
      _
    // Predicated region
    $region18: #{tpu_custom_call.1} parent=1 // pred_check
      _
    $region19: #{tpu_custom_call.1} parent=1 // pred_check_branch
      %57 = sbr.rel (0) target = $region21
    $region20: #{tpu_custom_call.1} parent=1 // pred_region
      %59 = dma.done [#allocation6], 1536
    $region21: #{tpu_custom_call.1} parent=1 // pred_fallthru
      _
    // Predicated region
    $region22: #{tpu_custom_call.1} parent=1 // pred_check
      _
    $region23: #{tpu_custom_call.1} parent=1 // pred_check_branch
      %61 = sbr.rel (0) target = $region25
    $region24: #{tpu_custom_call.1} parent=1 // pred_region
      %63 = dma.done [#allocation6], 1536
    $region25: #{tpu_custom_call.1} parent=1 // pred_fallthru
      _
    %v65 = vld [vmem:[#allocation2] sm:$0xff]
    %v66 = vld [vmem:[#allocation2 + $0x8] sm:$0xff]
    %v67 = vld [vmem:[#allocation2 + $0x10] sm:$0xff]
    %v68 = vld [vmem:[#allocation2 + $0x18] sm:$0xff]
    %v69 = vld [vmem:[#allocation2 + $0x20] sm:$0xff]
    %v70 = vld [vmem:[#allocation2 + $0x28] sm:$0xff]
    %v71 = vld [vmem:[#allocation2 + $0x30] sm:$0xff]
    %v72 = vld [vmem:[#allocation2 + $0x38] sm:$0xff]
    %v73 = vld [vmem:[#allocation2 + $0x40] sm:$0xff]
    %v74 = vld [vmem:[#allocation2 + $0x48] sm:$0xff]
    %v75 = vld [vmem:[#allocation2 + $0x50] sm:$0xff]
    %v76 = vld [vmem:[#allocation2 + $0x58] sm:$0xff]
    %v77 = vld [vmem:[#allocation5] sm:$0xff]
    %v78 = vld [vmem:[#allocation5 + $0x8] sm:$0xff]
    %v79 = vld [vmem:[#allocation5 + $0x10] sm:$0xff]
    %v80 = vld [vmem:[#allocation5 + $0x18] sm:$0xff]
    %v81 = vld [vmem:[#allocation5 + $0x20] sm:$0xff]
    %v82 = vld [vmem:[#allocation5 + $0x28] sm:$0xff]
    %v83 = vld [vmem:[#allocation5 + $0x30] sm:$0xff]
    %v84 = vld [vmem:[#allocation5 + $0x38] sm:$0xff]
    %v85 = vld [vmem:[#allocation5 + $0x40] sm:$0xff]
    %v86 = vld [vmem:[#allocation5 + $0x48] sm:$0xff]
    %v87 = vld [vmem:[#allocation5 + $0x50] sm:$0xff]
    %v88 = vld [vmem:[#allocation5 + $0x58] sm:$0xff]
    %v89 = vmul.f32 %v65, 0.31622776
    %v90 = vmul.f32 %v66, 0.31622776
    %v91 = vmul.f32 %v67, 0.31622776
    %v92 = vmul.f32 %v68, 0.31622776
    %v93 = vmul.f32 %v69, 0.31622776
    %v94 = vmul.f32 %v70, 0.31622776
    %v95 = vmul.f32 %v71, 0.31622776
    %v96 = vmul.f32 %v72, 0.31622776
    %v97 = vmul.f32 %v73, 0.31622776
    %v98 = vmul.f32 %v74, 0.31622776
    %v99 = vmul.f32 %v75, 0.31622776
    %v100 = vmul.f32 %v76, 0.31622776
    %v101 = vpack.c.bf16 %v89, %v89
    %v102 = vpack.c.bf16 %v90, %v90
    %v103 = vpack.c.bf16 %v91, %v91
    %v104 = vpack.c.bf16 %v92, %v92
    %v105 = vpack.c.bf16 %v93, %v93
    %v106 = vpack.c.bf16 %v94, %v94
    %v107 = vpack.c.bf16 %v95, %v95
    %v108 = vpack.c.bf16 %v96, %v96
    %v109 = vpack.c.bf16 %v97, %v97
    %v110 = vpack.c.bf16 %v98, %v98
    %v111 = vpack.c.bf16 %v99, %v99
    %v112 = vpack.c.bf16 %v100, %v100
    %v113 = vpack.c.bf16 %v77, %v77
    %v114 = vpack.c.bf16 %v78, %v78
    %v115 = vpack.c.bf16 %v79, %v79
    %v116 = vpack.c.bf16 %v80, %v80
    %v117 = vpack.c.bf16 %v81, %v81
    %v118 = vpack.c.bf16 %v82, %v82
    %v119 = vpack.c.bf16 %v83, %v83
    %v120 = vpack.c.bf16 %v84, %v84
    %v121 = vpack.c.bf16 %v85, %v85
    %v122 = vpack.c.bf16 %v86, %v86
    %v123 = vpack.c.bf16 %v87, %v87
    %v124 = vpack.c.bf16 %v88, %v88
    %vm125 = vcmask 408576
    %v127 = vsel %vm125, %v101, 0
    %v130 = vsel %vm125, %v113, 0
    %132 = vmatpush.bf16.xpose.msra.mxu0 0
    %133 = vmatpush.bf16.xpose.msra.mxu0 0
    %134 = vmatpush.bf16.xpose.msra.mxu0 0
    %135 = vmatpush.bf16.xpose.msra.mxu0 0
    %136 = vmatpush.bf16.xpose.msra.mxu0 0
    %137 = vmatpush.bf16.xpose.msra.mxu0 0
    %138 = vmatpush.bf16.xpose.msra.mxu0 0
    %139 = vmatpush.bf16.xpose.msra.mxu0 %v130
    %140 = vmatmul.bf16.gmra.mxu0 %v127
    %v141 = vpop.f32.mrf.mxu0
    %v142 = vadd.f32 0.0, %v141
    %v143 = vpop.f32.mrf.mxu0
    %144 = vdwg.mxu0
    %v146 = vsel %vm125, %v102, 0
    %v149 = vsel %vm125, %v114, 0
    %151 = vmatpush.bf16.xpose.msra.mxu0 0
    %152 = vmatpush.bf16.xpose.msra.mxu0 0
    %153 = vmatpush.bf16.xpose.msra.mxu0 0
    %154 = vmatpush.bf16.xpose.msra.mxu0 0
    %155 = vmatpush.bf16.xpose.msra.mxu0 0
    %156 = vmatpush.bf16.xpose.msra.mxu0 0
    %157 = vmatpush.bf16.xpose.msra.mxu0 0
    %158 = vmatpush.bf16.xpose.msra.mxu0 %v149
    %159 = vmatmul.bf16.gmra.mxu0 %v146
    %v160 = vpop.f32.mrf.mxu0
    %v161 = vadd.f32 0.0, %v160
    %v162 = vpop.f32.mrf.mxu0
    %163 = vdwg.mxu0
    %v165 = vsel %vm125, %v103, 0
    %v168 = vsel %vm125, %v115, 0
    %170 = vmatpush.bf16.xpose.msra.mxu0 0
    %171 = vmatpush.bf16.xpose.msra.mxu0 0
    %172 = vmatpush.bf16.xpose.msra.mxu0 0
    %173 = vmatpush.bf16.xpose.msra.mxu0 0
    %174 = vmatpush.bf16.xpose.msra.mxu0 0
    %175 = vmatpush.bf16.xpose.msra.mxu0 0
    %176 = vmatpush.bf16.xpose.msra.mxu0 0
    %177 = vmatpush.bf16.xpose.msra.mxu0 %v168
    %178 = vmatmul.bf16.gmra.mxu0 %v165
    %v179 = vpop.f32.mrf.mxu0
    %v180 = vadd.f32 0.0, %v179
    %v181 = vpop.f32.mrf.mxu0
    %182 = vdwg.mxu0
    %v184 = vsel %vm125, %v104, 0
    %v187 = vsel %vm125, %v116, 0
    %189 = vmatpush.bf16.xpose.msra.mxu0 0
    %190 = vmatpush.bf16.xpose.msra.mxu0 0
    %191 = vmatpush.bf16.xpose.msra.mxu0 0
    %192 = vmatpush.bf16.xpose.msra.mxu0 0
    %193 = vmatpush.bf16.xpose.msra.mxu0 0
    %194 = vmatpush.bf16.xpose.msra.mxu0 0
    %195 = vmatpush.bf16.xpose.msra.mxu0 0
    %196 = vmatpush.bf16.xpose.msra.mxu0 %v187
    %197 = vmatmul.bf16.gmra.mxu0 %v184
    %v198 = vpop.f32.mrf.mxu0
    %v199 = vadd.f32 0.0, %v198
    %v200 = vpop.f32.mrf.mxu0
    %201 = vdwg.mxu0
    %v203 = vsel %vm125, %v105, 0
    %v206 = vsel %vm125, %v117, 0
    %208 = vmatpush.bf16.xpose.msra.mxu0 0
    %209 = vmatpush.bf16.xpose.msra.mxu0 0
    %210 = vmatpush.bf16.xpose.msra.mxu0 0
    %211 = vmatpush.bf16.xpose.msra.mxu0 0
    %212 = vmatpush.bf16.xpose.msra.mxu0 0
    %213 = vmatpush.bf16.xpose.msra.mxu0 0
    %214 = vmatpush.bf16.xpose.msra.mxu0 0
    %215 = vmatpush.bf16.xpose.msra.mxu0 %v206
    %216 = vmatmul.bf16.gmra.mxu0 %v203
    %v217 = vpop.f32.mrf.mxu0
    %v218 = vadd.f32 0.0, %v217
    %v219 = vpop.f32.mrf.mxu0
    %220 = vdwg.mxu0
    %v222 = vsel %vm125, %v106, 0
    %v225 = vsel %vm125, %v118, 0
    %227 = vmatpush.bf16.xpose.msra.mxu0 0
    %228 = vmatpush.bf16.xpose.msra.mxu0 0
    %229 = vmatpush.bf16.xpose.msra.mxu0 0
    %230 = vmatpush.bf16.xpose.msra.mxu0 0
    %231 = vmatpush.bf16.xpose.msra.mxu0 0
    %232 = vmatpush.bf16.xpose.msra.mxu0 0
    %233 = vmatpush.bf16.xpose.msra.mxu0 0
    %234 = vmatpush.bf16.xpose.msra.mxu0 %v225
    %235 = vmatmul.bf16.gmra.mxu0 %v222
    %v236 = vpop.f32.mrf.mxu0
    %v237 = vadd.f32 0.0, %v236
    %v238 = vpop.f32.mrf.mxu0
    %239 = vdwg.mxu0
    %v241 = vsel %vm125, %v107, 0
    %v244 = vsel %vm125, %v119, 0
    %246 = vmatpush.bf16.xpose.msra.mxu0 0
    %247 = vmatpush.bf16.xpose.msra.mxu0 0
    %248 = vmatpush.bf16.xpose.msra.mxu0 0
    %249 = vmatpush.bf16.xpose.msra.mxu0 0
    %250 = vmatpush.bf16.xpose.msra.mxu0 0
    %251 = vmatpush.bf16.xpose.msra.mxu0 0
    %252 = vmatpush.bf16.xpose.msra.mxu0 0
    %253 = vmatpush.bf16.xpose.msra.mxu0 %v244
    %254 = vmatmul.bf16.gmra.mxu0 %v241
    %v255 = vpop.f32.mrf.mxu0
    %v256 = vadd.f32 0.0, %v255
    %v257 = vpop.f32.mrf.mxu0
    %258 = vdwg.mxu0
    %v260 = vsel %vm125, %v108, 0
    %v263 = vsel %vm125, %v120, 0
    %265 = vmatpush.bf16.xpose.msra.mxu0 0
    %266 = vmatpush.bf16.xpose.msra.mxu0 0
    %267 = vmatpush.bf16.xpose.msra.mxu0 0
    %268 = vmatpush.bf16.xpose.msra.mxu0 0
    %269 = vmatpush.bf16.xpose.msra.mxu0 0
    %270 = vmatpush.bf16.xpose.msra.mxu0 0
    %271 = vmatpush.bf16.xpose.msra.mxu0 0
    %272 = vmatpush.bf16.xpose.msra.mxu0 %v263
    %273 = vmatmul.bf16.gmra.mxu0 %v260
    %v274 = vpop.f32.mrf.mxu0
    %v275 = vadd.f32 0.0, %v274
    %v276 = vpop.f32.mrf.mxu0
    %277 = vdwg.mxu0
    %v279 = vsel %vm125, %v109, 0
    %v282 = vsel %vm125, %v121, 0
    %284 = vmatpush.bf16.xpose.msra.mxu0 0
    %285 = vmatpush.bf16.xpose.msra.mxu0 0
    %286 = vmatpush.bf16.xpose.msra.mxu0 0
    %287 = vmatpush.bf16.xpose.msra.mxu0 0
    %288 = vmatpush.bf16.xpose.msra.mxu0 0
    %289 = vmatpush.bf16.xpose.msra.mxu0 0
    %290 = vmatpush.bf16.xpose.msra.mxu0 0
    %291 = vmatpush.bf16.xpose.msra.mxu0 %v282
    %292 = vmatmul.bf16.gmra.mxu0 %v279
    %v293 = vpop.f32.mrf.mxu0
    %v294 = vadd.f32 0.0, %v293
    %v295 = vpop.f32.mrf.mxu0
    %296 = vdwg.mxu0
    %v298 = vsel %vm125, %v110, 0
    %v301 = vsel %vm125, %v122, 0
    %303 = vmatpush.bf16.xpose.msra.mxu0 0
    %304 = vmatpush.bf16.xpose.msra.mxu0 0
    %305 = vmatpush.bf16.xpose.msra.mxu0 0
    %306 = vmatpush.bf16.xpose.msra.mxu0 0
    %307 = vmatpush.bf16.xpose.msra.mxu0 0
    %308 = vmatpush.bf16.xpose.msra.mxu0 0
    %309 = vmatpush.bf16.xpose.msra.mxu0 0
    %310 = vmatpush.bf16.xpose.msra.mxu0 %v301
    %311 = vmatmul.bf16.gmra.mxu0 %v298
    %v312 = vpop.f32.mrf.mxu0
    %v313 = vadd.f32 0.0, %v312
    %v314 = vpop.f32.mrf.mxu0
    %315 = vdwg.mxu0
    %v317 = vsel %vm125, %v111, 0
    %v320 = vsel %vm125, %v123, 0
    %322 = vmatpush.bf16.xpose.msra.mxu0 0
    %323 = vmatpush.bf16.xpose.msra.mxu0 0
    %324 = vmatpush.bf16.xpose.msra.mxu0 0
    %325 = vmatpush.bf16.xpose.msra.mxu0 0
    %326 = vmatpush.bf16.xpose.msra.mxu0 0
    %327 = vmatpush.bf16.xpose.msra.mxu0 0
    %328 = vmatpush.bf16.xpose.msra.mxu0 0
    %329 = vmatpush.bf16.xpose.msra.mxu0 %v320
    %330 = vmatmul.bf16.gmra.mxu0 %v317
    %v331 = vpop.f32.mrf.mxu0
    %v332 = vadd.f32 0.0, %v331
    %v333 = vpop.f32.mrf.mxu0
    %334 = vdwg.mxu0
    %v336 = vsel %vm125, %v112, 0
    %v339 = vsel %vm125, %v124, 0
    %341 = vmatpush.bf16.xpose.msra.mxu0 0
    %342 = vmatpush.bf16.xpose.msra.mxu0 0
    %343 = vmatpush.bf16.xpose.msra.mxu0 0
    %344 = vmatpush.bf16.xpose.msra.mxu0 0
    %345 = vmatpush.bf16.xpose.msra.mxu0 0
    %346 = vmatpush.bf16.xpose.msra.mxu0 0
    %347 = vmatpush.bf16.xpose.msra.mxu0 0
    %348 = vmatpush.bf16.xpose.msra.mxu0 %v339
    %349 = vmatmul.bf16.gmra.mxu0 %v336
    %v350 = vpop.f32.mrf.mxu0
    %v351 = vadd.f32 0.0, %v350
    %v352 = vpop.f32.mrf.mxu0
    %353 = vdwg.mxu0
    %vm354 = vcmask 64512
    %v355 = vsel %vm354, %v142, -inf
    %356 = vmax.xlane.f32.xlu0 %v355
    %v357 = vpop.xlane.xlu0 %356
    %v358 = vsel %vm354, %v161, -inf
    %359 = vmax.xlane.f32.xlu0 %v358
    %v360 = vpop.xlane.xlu0 %359
    %v361 = vsel %vm354, %v180, -inf
    %362 = vmax.xlane.f32.xlu0 %v361
    %v363 = vpop.xlane.xlu0 %362
    %v364 = vsel %vm354, %v199, -inf
    %365 = vmax.xlane.f32.xlu0 %v364
    %v366 = vpop.xlane.xlu0 %365
    %v367 = vsel %vm354, %v218, -inf
    %368 = vmax.xlane.f32.xlu0 %v367
    %v369 = vpop.xlane.xlu0 %368
    %v370 = vsel %vm354, %v237, -inf
    %371 = vmax.xlane.f32.xlu0 %v370
    %v372 = vpop.xlane.xlu0 %371
    %v373 = vsel %vm354, %v256, -inf
    %374 = vmax.xlane.f32.xlu0 %v373
    %v375 = vpop.xlane.xlu0 %374
    %v376 = vsel %vm354, %v275, -inf
    %377 = vmax.xlane.f32.xlu0 %v376
    %v378 = vpop.xlane.xlu0 %377
    %v379 = vsel %vm354, %v294, -inf
    %380 = vmax.xlane.f32.xlu0 %v379
    %v381 = vpop.xlane.xlu0 %380
    %v382 = vsel %vm354, %v313, -inf
    %383 = vmax.xlane.f32.xlu0 %v382
    %v384 = vpop.xlane.xlu0 %383
    %v385 = vsel %vm354, %v332, -inf
    %386 = vmax.xlane.f32.xlu0 %v385
    %v387 = vpop.xlane.xlu0 %386
    %v388 = vsel %vm354, %v351, -inf
    %389 = vmax.xlane.f32.xlu0 %v388
    %v390 = vpop.xlane.xlu0 %389
    %v391 = vsub.f32 %v142, %v357
    %v392 = vsub.f32 %v161, %v360
    %v393 = vsub.f32 %v180, %v363
    %v394 = vsub.f32 %v199, %v366
    %v395 = vsub.f32 %v218, %v369
    %v396 = vsub.f32 %v237, %v372
    %v397 = vsub.f32 %v256, %v375
    %v398 = vsub.f32 %v275, %v378
    %v399 = vsub.f32 %v294, %v381
    %v400 = vsub.f32 %v313, %v384
    %v401 = vsub.f32 %v332, %v387
    %v402 = vsub.f32 %v351, %v390
    %v403 = vmul.f32 %v391, 1.442695
    %v404 = vpow.pop %v403
    %v405 = vmul.f32 %v392, 1.442695
    %v406 = vpow.pop %v405
    %v407 = vmul.f32 %v393, 1.442695
    %v408 = vpow.pop %v407
    %v409 = vmul.f32 %v394, 1.442695
    %v410 = vpow.pop %v409
    %v411 = vmul.f32 %v395, 1.442695
    %v412 = vpow.pop %v411
    %v413 = vmul.f32 %v396, 1.442695
    %v414 = vpow.pop %v413
    %v415 = vmul.f32 %v397, 1.442695
    %v416 = vpow.pop %v415
    %v417 = vmul.f32 %v398, 1.442695
    %v418 = vpow.pop %v417
    %v419 = vmul.f32 %v399, 1.442695
    %v420 = vpow.pop %v419
    %v421 = vmul.f32 %v400, 1.442695
    %v422 = vpow.pop %v421
    %v423 = vmul.f32 %v401, 1.442695
    %v424 = vpow.pop %v423
    %v425 = vmul.f32 %v402, 1.442695
    %v426 = vpow.pop %v425
    %v427 = vsel %vm354, %v404, 0.0
    %428 = vadd.xlane.f32.xlu0 %v427
    %v429 = vpop.xlane.xlu0 %428
    %v430 = vsel %vm354, %v406, 0.0
    %431 = vadd.xlane.f32.xlu0 %v430
    %v432 = vpop.xlane.xlu0 %431
    %v433 = vsel %vm354, %v408, 0.0
    %434 = vadd.xlane.f32.xlu0 %v433
    %v435 = vpop.xlane.xlu0 %434
    %v436 = vsel %vm354, %v410, 0.0
    %437 = vadd.xlane.f32.xlu0 %v436
    %v438 = vpop.xlane.xlu0 %437
    %v439 = vsel %vm354, %v412, 0.0
    %440 = vadd.xlane.f32.xlu0 %v439
    %v441 = vpop.xlane.xlu0 %440
    %v442 = vsel %vm354, %v414, 0.0
    %443 = vadd.xlane.f32.xlu0 %v442
    %v444 = vpop.xlane.xlu0 %443
    %v445 = vsel %vm354, %v416, 0.0
    %446 = vadd.xlane.f32.xlu0 %v445
    %v447 = vpop.xlane.xlu0 %446
    %v448 = vsel %vm354, %v418, 0.0
    %449 = vadd.xlane.f32.xlu0 %v448
    %v450 = vpop.xlane.xlu0 %449
    %v451 = vsel %vm354, %v420, 0.0
    %452 = vadd.xlane.f32.xlu0 %v451
    %v453 = vpop.xlane.xlu0 %452
    %v454 = vsel %vm354, %v422, 0.0
    %455 = vadd.xlane.f32.xlu0 %v454
    %v456 = vpop.xlane.xlu0 %455
    %v457 = vsel %vm354, %v424, 0.0
    %458 = vadd.xlane.f32.xlu0 %v457
    %v459 = vpop.xlane.xlu0 %458
    %v460 = vsel %vm354, %v426, 0.0
    %461 = vadd.xlane.f32.xlu0 %v460
    %v462 = vpop.xlane.xlu0 %461
    %v463 = vrcp.pop %v429
    %v464 = vrcp.pop %v432
    %v465 = vrcp.pop %v435
    %v466 = vrcp.pop %v438
    %v467 = vrcp.pop %v441
    %v468 = vrcp.pop %v444
    %v469 = vrcp.pop %v447
    %v470 = vrcp.pop %v450
    %v471 = vrcp.pop %v453
    %v472 = vrcp.pop %v456
    %v473 = vrcp.pop %v459
    %v474 = vrcp.pop %v462
    %v475 = vmul.f32 %v404, %v463
    %v476 = vmul.f32 %v406, %v464
    %v477 = vmul.f32 %v408, %v465
    %v478 = vmul.f32 %v410, %v466
    %v479 = vmul.f32 %v412, %v467
    %v480 = vmul.f32 %v414, %v468
    %v481 = vmul.f32 %v416, %v469
    %v482 = vmul.f32 %v418, %v470
    %v483 = vmul.f32 %v420, %v471
    %v484 = vmul.f32 %v422, %v472
    %v485 = vmul.f32 %v424, %v473
    %v486 = vmul.f32 %v426, %v474
    %v487 = vpack.c.bf16 %v475, %v475
    %v488 = vpack.c.bf16 %v476, %v476
    %v489 = vpack.c.bf16 %v477, %v477
    %v490 = vpack.c.bf16 %v478, %v478
    %v491 = vpack.c.bf16 %v479, %v479
    %v492 = vpack.c.bf16 %v480, %v480
    %v493 = vpack.c.bf16 %v481, %v481
    %v494 = vpack.c.bf16 %v482, %v482
    %v495 = vpack.c.bf16 %v483, %v483
    %v496 = vpack.c.bf16 %v484, %v484
    %v497 = vpack.c.bf16 %v485, %v485
    %v498 = vpack.c.bf16 %v486, %v486
    %v499 = vld [vmem:[#allocation7] sm:$0xff]
    %v500 = vld [vmem:[#allocation7 + $0x8] sm:$0xff]
    %v501 = vld [vmem:[#allocation7 + $0x10] sm:$0xff]
    %v502 = vld [vmem:[#allocation7 + $0x18] sm:$0xff]
    %v503 = vld [vmem:[#allocation7 + $0x20] sm:$0xff]
    %v504 = vld [vmem:[#allocation7 + $0x28] sm:$0xff]
    %v505 = vld [vmem:[#allocation7 + $0x30] sm:$0xff]
    %v506 = vld [vmem:[#allocation7 + $0x38] sm:$0xff]
    %v507 = vld [vmem:[#allocation7 + $0x40] sm:$0xff]
    %v508 = vld [vmem:[#allocation7 + $0x48] sm:$0xff]
    %v509 = vld [vmem:[#allocation7 + $0x50] sm:$0xff]
    %v510 = vld [vmem:[#allocation7 + $0x58] sm:$0xff]
    %v511 = vpack.c.bf16 %v499, %v499
    %v512 = vpack.c.bf16 %v500, %v500
    %v513 = vpack.c.bf16 %v501, %v501
    %v514 = vpack.c.bf16 %v502, %v502
    %v515 = vpack.c.bf16 %v503, %v503
    %v516 = vpack.c.bf16 %v504, %v504
    %v517 = vpack.c.bf16 %v505, %v505
    %v518 = vpack.c.bf16 %v506, %v506
    %v519 = vpack.c.bf16 %v507, %v507
    %v520 = vpack.c.bf16 %v508, %v508
    %v521 = vpack.c.bf16 %v509, %v509
    %v522 = vpack.c.bf16 %v510, %v510
    %v524 = vsel %vm354, %v487, 0
    %vm526 = vcmask 1043456
    %v528 = vsel %vm526, %v511, 0
    %530 = vmatpush.bf16.msra.mxu0 0
    %531 = vmatpush.bf16.msra.mxu0 0
    %532 = vmatpush.bf16.msra.mxu0 0
    %533 = vmatpush.bf16.msra.mxu0 0
    %534 = vmatpush.bf16.msra.mxu0 0
    %535 = vmatpush.bf16.msra.mxu0 0
    %536 = vmatpush.bf16.msra.mxu0 0
    %537 = vmatpush.bf16.msra.mxu0 %v528
    %538 = vmatmul.bf16.gmra.mxu0 %v524
    %v539 = vpop.f32.mrf.mxu0
    %v540 = vadd.f32 0.0, %v539
    %v541 = vpop.f32.mrf.mxu0
    %542 = vdwg.mxu0
    %v544 = vsel %vm354, %v488, 0
    %v547 = vsel %vm526, %v512, 0
    %549 = vmatpush.bf16.msra.mxu0 0
    %550 = vmatpush.bf16.msra.mxu0 0
    %551 = vmatpush.bf16.msra.mxu0 0
    %552 = vmatpush.bf16.msra.mxu0 0
    %553 = vmatpush.bf16.msra.mxu0 0
    %554 = vmatpush.bf16.msra.mxu0 0
    %555 = vmatpush.bf16.msra.mxu0 0
    %556 = vmatpush.bf16.msra.mxu0 %v547
    %557 = vmatmul.bf16.gmra.mxu0 %v544
    %v558 = vpop.f32.mrf.mxu0
    %v559 = vadd.f32 0.0, %v558
    %v560 = vpop.f32.mrf.mxu0
    %561 = vdwg.mxu0
    %v563 = vsel %vm354, %v489, 0
    %v566 = vsel %vm526, %v513, 0
    %568 = vmatpush.bf16.msra.mxu0 0
    %569 = vmatpush.bf16.msra.mxu0 0
    %570 = vmatpush.bf16.msra.mxu0 0
    %571 = vmatpush.bf16.msra.mxu0 0
    %572 = vmatpush.bf16.msra.mxu0 0
    %573 = vmatpush.bf16.msra.mxu0 0
    %574 = vmatpush.bf16.msra.mxu0 0
    %575 = vmatpush.bf16.msra.mxu0 %v566
    %576 = vmatmul.bf16.gmra.mxu0 %v563
    %v577 = vpop.f32.mrf.mxu0
    %v578 = vadd.f32 0.0, %v577
    %v579 = vpop.f32.mrf.mxu0
    %580 = vdwg.mxu0
    %v582 = vsel %vm354, %v490, 0
    %v585 = vsel %vm526, %v514, 0
    %587 = vmatpush.bf16.msra.mxu0 0
    %588 = vmatpush.bf16.msra.mxu0 0
    %589 = vmatpush.bf16.msra.mxu0 0
    %590 = vmatpush.bf16.msra.mxu0 0
    %591 = vmatpush.bf16.msra.mxu0 0
    %592 = vmatpush.bf16.msra.mxu0 0
    %593 = vmatpush.bf16.msra.mxu0 0
    %594 = vmatpush.bf16.msra.mxu0 %v585
    %595 = vmatmul.bf16.gmra.mxu0 %v582
    %v596 = vpop.f32.mrf.mxu0
    %v597 = vadd.f32 0.0, %v596
    %v598 = vpop.f32.mrf.mxu0
    %599 = vdwg.mxu0
    %v601 = vsel %vm354, %v491, 0
    %v604 = vsel %vm526, %v515, 0
    %606 = vmatpush.bf16.msra.mxu0 0
    %607 = vmatpush.bf16.msra.mxu0 0
    %608 = vmatpush.bf16.msra.mxu0 0
    %609 = vmatpush.bf16.msra.mxu0 0
    %610 = vmatpush.bf16.msra.mxu0 0
    %611 = vmatpush.bf16.msra.mxu0 0
    %612 = vmatpush.bf16.msra.mxu0 0
    %613 = vmatpush.bf16.msra.mxu0 %v604
    %614 = vmatmul.bf16.gmra.mxu0 %v601
    %v615 = vpop.f32.mrf.mxu0
    %v616 = vadd.f32 0.0, %v615
    %v617 = vpop.f32.mrf.mxu0
    %618 = vdwg.mxu0
    %v620 = vsel %vm354, %v492, 0
    %v623 = vsel %vm526, %v516, 0
    %625 = vmatpush.bf16.msra.mxu0 0
    %626 = vmatpush.bf16.msra.mxu0 0
    %627 = vmatpush.bf16.msra.mxu0 0
    %628 = vmatpush.bf16.msra.mxu0 0
    %629 = vmatpush.bf16.msra.mxu0 0
    %630 = vmatpush.bf16.msra.mxu0 0
    %631 = vmatpush.bf16.msra.mxu0 0
    %632 = vmatpush.bf16.msra.mxu0 %v623
    %633 = vmatmul.bf16.gmra.mxu0 %v620
    %v634 = vpop.f32.mrf.mxu0
    %v635 = vadd.f32 0.0, %v634
    %v636 = vpop.f32.mrf.mxu0
    %637 = vdwg.mxu0
    %v639 = vsel %vm354, %v493, 0
    %v642 = vsel %vm526, %v517, 0
    %644 = vmatpush.bf16.msra.mxu0 0
    %645 = vmatpush.bf16.msra.mxu0 0
    %646 = vmatpush.bf16.msra.mxu0 0
    %647 = vmatpush.bf16.msra.mxu0 0
    %648 = vmatpush.bf16.msra.mxu0 0
    %649 = vmatpush.bf16.msra.mxu0 0
    %650 = vmatpush.bf16.msra.mxu0 0
    %651 = vmatpush.bf16.msra.mxu0 %v642
    %652 = vmatmul.bf16.gmra.mxu0 %v639
    %v653 = vpop.f32.mrf.mxu0
    %v654 = vadd.f32 0.0, %v653
    %v655 = vpop.f32.mrf.mxu0
    %656 = vdwg.mxu0
    %v658 = vsel %vm354, %v494, 0
    %v661 = vsel %vm526, %v518, 0
    %663 = vmatpush.bf16.msra.mxu0 0
    %664 = vmatpush.bf16.msra.mxu0 0
    %665 = vmatpush.bf16.msra.mxu0 0
    %666 = vmatpush.bf16.msra.mxu0 0
    %667 = vmatpush.bf16.msra.mxu0 0
    %668 = vmatpush.bf16.msra.mxu0 0
    %669 = vmatpush.bf16.msra.mxu0 0
    %670 = vmatpush.bf16.msra.mxu0 %v661
    %671 = vmatmul.bf16.gmra.mxu0 %v658
    %v672 = vpop.f32.mrf.mxu0
    %v673 = vadd.f32 0.0, %v672
    %v674 = vpop.f32.mrf.mxu0
    %675 = vdwg.mxu0
    %v677 = vsel %vm354, %v495, 0
    %v680 = vsel %vm526, %v519, 0
    %682 = vmatpush.bf16.msra.mxu0 0
    %683 = vmatpush.bf16.msra.mxu0 0
    %684 = vmatpush.bf16.msra.mxu0 0
    %685 = vmatpush.bf16.msra.mxu0 0
    %686 = vmatpush.bf16.msra.mxu0 0
    %687 = vmatpush.bf16.msra.mxu0 0
    %688 = vmatpush.bf16.msra.mxu0 0
    %689 = vmatpush.bf16.msra.mxu0 %v680
    %690 = vmatmul.bf16.gmra.mxu0 %v677
    %v691 = vpop.f32.mrf.mxu0
    %v692 = vadd.f32 0.0, %v691
    %v693 = vpop.f32.mrf.mxu0
    %694 = vdwg.mxu0
    %v696 = vsel %vm354, %v496, 0
    %v699 = vsel %vm526, %v520, 0
    %701 = vmatpush.bf16.msra.mxu0 0
    %702 = vmatpush.bf16.msra.mxu0 0
    %703 = vmatpush.bf16.msra.mxu0 0
    %704 = vmatpush.bf16.msra.mxu0 0
    %705 = vmatpush.bf16.msra.mxu0 0
    %706 = vmatpush.bf16.msra.mxu0 0
    %707 = vmatpush.bf16.msra.mxu0 0
    %708 = vmatpush.bf16.msra.mxu0 %v699
    %709 = vmatmul.bf16.gmra.mxu0 %v696
    %v710 = vpop.f32.mrf.mxu0
    %v711 = vadd.f32 0.0, %v710
    %v712 = vpop.f32.mrf.mxu0
    %713 = vdwg.mxu0
    %v715 = vsel %vm354, %v497, 0
    %v718 = vsel %vm526, %v521, 0
    %720 = vmatpush.bf16.msra.mxu0 0
    %721 = vmatpush.bf16.msra.mxu0 0
    %722 = vmatpush.bf16.msra.mxu0 0
    %723 = vmatpush.bf16.msra.mxu0 0
    %724 = vmatpush.bf16.msra.mxu0 0
    %725 = vmatpush.bf16.msra.mxu0 0
    %726 = vmatpush.bf16.msra.mxu0 0
    %727 = vmatpush.bf16.msra.mxu0 %v718
    %728 = vmatmul.bf16.gmra.mxu0 %v715
    %v729 = vpop.f32.mrf.mxu0
    %v730 = vadd.f32 0.0, %v729
    %v731 = vpop.f32.mrf.mxu0
    %732 = vdwg.mxu0
    %v734 = vsel %vm354, %v498, 0
    %v737 = vsel %vm526, %v522, 0
    %739 = vmatpush.bf16.msra.mxu0 0
    %740 = vmatpush.bf16.msra.mxu0 0
    %741 = vmatpush.bf16.msra.mxu0 0
    %742 = vmatpush.bf16.msra.mxu0 0
    %743 = vmatpush.bf16.msra.mxu0 0
    %744 = vmatpush.bf16.msra.mxu0 0
    %745 = vmatpush.bf16.msra.mxu0 0
    %746 = vmatpush.bf16.msra.mxu0 %v737
    %747 = vmatmul.bf16.gmra.mxu0 %v734
    %v748 = vpop.f32.mrf.mxu0
    %v749 = vadd.f32 0.0, %v748
    %v750 = vpop.f32.mrf.mxu0
    %751 = vdwg.mxu0
    %752 = vst.msk [vmem:[#allocation8] sm:$0xff] %vm125, %v540
    %753 = vst.msk [vmem:[#allocation8 + $0x8] sm:$0xff] %vm125, %v559
    %754 = vst.msk [vmem:[#allocation8 + $0x10] sm:$0xff] %vm125, %v578
    %755 = vst.msk [vmem:[#allocation8 + $0x18] sm:$0xff] %vm125, %v597
    %756 = vst.msk [vmem:[#allocation8 + $0x20] sm:$0xff] %vm125, %v616
    %757 = vst.msk [vmem:[#allocation8 + $0x28] sm:$0xff] %vm125, %v635
    %758 = vst.msk [vmem:[#allocation8 + $0x30] sm:$0xff] %vm125, %v654
    %759 = vst.msk [vmem:[#allocation8 + $0x38] sm:$0xff] %vm125, %v673
    %760 = vst.msk [vmem:[#allocation8 + $0x40] sm:$0xff] %vm125, %v692
    %761 = vst.msk [vmem:[#allocation8 + $0x48] sm:$0xff] %vm125, %v711
    %762 = vst.msk [vmem:[#allocation8 + $0x50] sm:$0xff] %vm125, %v730
    %763 = vst.msk [vmem:[#allocation8 + $0x58] sm:$0xff] %vm125, %v749
    %764 = vst.msk [vmem:[%s4] sm:$0xff] %vm354, %v475
    %765 = vst.msk [vmem:[%s4 + $0x8] sm:$0xff] %vm354, %v476
    %766 = vst.msk [vmem:[%s4 + $0x10] sm:$0xff] %vm354, %v477
    %767 = vst.msk [vmem:[%s4 + $0x18] sm:$0xff] %vm354, %v478
    %768 = vst.msk [vmem:[%s4 + $0x20] sm:$0xff] %vm354, %v479
    %769 = vst.msk [vmem:[%s4 + $0x28] sm:$0xff] %vm354, %v480
    %770 = vst.msk [vmem:[%s4 + $0x30] sm:$0xff] %vm354, %v481
    %771 = vst.msk [vmem:[%s4 + $0x38] sm:$0xff] %vm354, %v482
    %772 = vst.msk [vmem:[%s4 + $0x40] sm:$0xff] %vm354, %v483
    %773 = vst.msk [vmem:[%s4 + $0x48] sm:$0xff] %vm354, %v484
    %774 = vst.msk [vmem:[%s4 + $0x50] sm:$0xff] %vm354, %v485
    %775 = vst.msk [vmem:[%s4 + $0x58] sm:$0xff] %vm354, %v486
    // Predicated region
    $region26: #{tpu_custom_call.1} parent=1 // pred_check
      _
    $region27: #{tpu_custom_call.1} parent=1 // pred_check_branch
      %777 = sbr.rel (0) target = $region29
    $region28: #{tpu_custom_call.1} parent=1 // pred_region
      %779 = vsyncadd [#allocation4], 0
      %s780 = sshll.u32 [#allocation8], 4
      %s781 = int_to_ptr.vmem [resolvable:$true] %s780
      %s782 = sshll.u32 %s3, 4
      %s783 = int_to_ptr.hbm [resolvable:$true] %s782
      %788 = dma.vmem_to_hbm [thread:$0]  %s781, 1536, %s783, [#allocation4], 128, 128, 8
    $region29: #{tpu_custom_call.1} parent=1 // pred_fallthru
      _
    // Predicated region
    $region30: #{tpu_custom_call.1} parent=1 // pred_check
      _
    $region31: #{tpu_custom_call.1} parent=1 // pred_check_branch
      %790 = sbr.rel (0) target = $region33
    $region32: #{tpu_custom_call.1} parent=1 // pred_region
      _
    $region33: #{tpu_custom_call.1} parent=1 // pred_fallthru
      _
    // Predicated region
    $region34: #{tpu_custom_call.1} parent=1 // pred_check
      _
    $region35: #{tpu_custom_call.1} parent=1 // pred_check_branch
      %792 = sbr.rel (0) target = $region37
    $region36: #{tpu_custom_call.1} parent=1 // pred_region
      %794 = dma.done [#allocation4], 1536
    $region37: #{tpu_custom_call.1} parent=1 // pred_fallthru
      _
    // Predicated region
    $region38: #{tpu_custom_call.1} parent=1 // pred_check
      _
    $region39: #{tpu_custom_call.1} parent=1 // pred_check_branch
      %796 = sbr.rel (0) target = $region41
    $region40: #{tpu_custom_call.1} parent=1 // pred_region
      _
    $region41: #{tpu_custom_call.1} parent=1 // pred_fallthru
      _
    %797 = vsyncpa [#allocation3], 1
    %798 = vsyncpa [#allocation6], 1
    %799 = vsyncpa [#allocation4], 1

</llo_original>
